<compile_context>
chip_gen: v7x
topology: tpu7x:2x2x1
jax: 0.10.0
libtpu: 0.0.40
codegen_flags: <defaults>
</compile_context>

<pallas_src>
import functools

import jax
import jax.numpy as jnp
from jax import lax
from jax.experimental import pallas as pl
from jax.experimental.pallas import tpu as pltpu

_SMALL_C_MAX = 16     # <= this many classes: fully unrolled per-class VPU loop
_CHUNK_ROWS = 8       # sublane rows (of 128 batch elems) per inner step -> one (8,128) vreg


def _cdiv(a, b):
    return (a + b - 1) // b


def _round_up(x, m):
    return _cdiv(x, m) * m


def _focal_modulation(omp, gamma):
    """(1 - p_t) ** gamma without a float-exponent pow for integer gamma."""
    if gamma == 2.0:
        return omp * omp
    if float(gamma).is_integer() and gamma >= 0.0:
        g = int(gamma)
        if g == 0:
            return jnp.ones_like(omp)
        mod = omp
        for _ in range(g - 1):
            mod = mod * omp
        return mod
    return omp ** gamma


def _finish_loss(m, sumexp, logit_t, exp_t, alpha_t, gamma):
    # ce = -log p_t via the log-sum-exp pieces; clamps only guard f32 rounding.
    ce = jnp.maximum(jnp.log(sumexp) + (m - logit_t), 0.0)
    pt = exp_t * pl.reciprocal(sumexp, approx=True)     # reuse lse denominator, EUP approx
    omp = jnp.maximum(1.0 - pt, 0.0)
    return alpha_t * _focal_modulation(omp, gamma) * ce


def _chunk_loss_small_c(logit, tgt, alpha_rows, gamma, num_classes):
    """Loss for one (8,128) batch chunk; class loop fully unrolled (small C)."""
    m = logit[0]
    for c in range(1, num_classes):
        m = jnp.maximum(m, logit[c])
    sumexp = jnp.zeros_like(m)
    logit_t = jnp.zeros_like(m)
    exp_t = jnp.zeros_like(m)
    alpha_t = jnp.zeros_like(m)
    for c in range(num_classes):
        row = logit[c]
        e = jnp.exp(row - m)
        sumexp = sumexp + e
        sel = tgt == c          # sentinel (-1) / out-of-range targets never match -> 0 loss
        logit_t = jnp.where(sel, row, logit_t)
        exp_t = jnp.where(sel, e, exp_t)
        alpha_t = jnp.where(sel, alpha_rows[c], alpha_t)
    return _finish_loss(m, sumexp, logit_t, exp_t, alpha_t, gamma)


def _chunk_loss_large_c(logit, tgt, alpha_full, gamma):
    """Loss for one (8,128) chunk via class-axis (axis 0) vector reductions."""
    m = jnp.max(logit, axis=0)                                       # (8,128)
    e = jnp.exp(logit - m[None, :, :])                               # (C,8,128)
    sel = lax.broadcasted_iota(jnp.int32, logit.shape, 0) == tgt[None, :, :]
    sel_f = sel.astype(jnp.float32)
    sumexp = jnp.sum(e, axis=0)
    logit_t = jnp.sum(logit * sel_f, axis=0)
    exp_t = jnp.sum(e * sel_f, axis=0)
    alpha_t = jnp.sum(alpha_full * sel_f, axis=0)
    return _finish_loss(m, sumexp, logit_t, exp_t, alpha_t, gamma)


def _focal_loss_kernel(logits_ref, targets_ref, alpha_ref, out_ref, *,
                       gamma, num_classes, chunks):
    i = pl.program_id(1)                    # inner ("arbitrary") batch-reduction axis

    @pl.when(i == 0)
    def _():
        out_ref[...] = jnp.zeros_like(out_ref)

    small_c = num_classes <= _SMALL_C_MAX
    if small_c:
        # Hoist the lane-broadcast alpha rows out of the chunk loop (no per-iter broadcast).
        alpha_rows = [jnp.broadcast_to(alpha_ref[c], (_CHUNK_ROWS, 128))
                      for c in range(num_classes)]
    else:
        alpha_full = alpha_ref[...]                      # (C, 1, 128)

    def chunk_body(j, acc):
        r0 = pl.multiple_of(j * _CHUNK_ROWS, _CHUNK_ROWS)
        logit = logits_ref[:, pl.ds(r0, _CHUNK_ROWS), :].astype(jnp.float32)  # (C,8,128)
        tgt = targets_ref[pl.ds(r0, _CHUNK_ROWS), :]                           # (8,128)
        if small_c:
            loss = _chunk_loss_small_c(logit, tgt, alpha_rows, gamma, num_classes)
        else:
            loss = _chunk_loss_large_c(logit, tgt, alpha_full, gamma)
        return acc + loss                                # (8,128) register accumulator

    acc = lax.fori_loop(0, chunks, chunk_body,
                        jnp.zeros((_CHUNK_ROWS, 128), jnp.float32),
                        unroll=small_c)
    out_ref[...] += acc[None, :, :]                      # output block resident across i


def focal_loss(logits, targets, alpha=None, gamma=2.0, reduction="mean", *,
               max_tile_elems=16384, vmem_budget_bytes=8 * 1024 * 1024,
               num_core_splits=2):
    """Focal loss matching FocalLoss.forward (reduction 'mean' / 'sum').

    logits : (N, C) float (any float dtype; cast to f32 inside the kernel)
    targets: (N,)   integer class ids, assumed in [0, C)
    alpha  : optional (C,) class weights
    """
    n, c = logits.shape
    if reduction not in ("mean", "sum"):
        # TODO(synk): reduction='none' (per-example loss vector output) is not implemented.
        raise NotImplementedError("only 'mean' and 'sum' reductions are supported")
    if alpha is None:
        alpha = jnp.ones((c,), dtype=jnp.float32)
    alpha = jnp.asarray(alpha, dtype=jnp.float32)

    # --- tiling: batch axis as (rows of 8 sublanes) x 128 lanes --------------------------
    rows_needed = _round_up(max(n, 1), _CHUNK_ROWS * 128) // 128     # multiple of 8
    itemsize = logits.dtype.itemsize
    bytes_per_row = 128 * (c * itemsize + 4)             # logits row + int32 targets row
    ts_cap = (vmem_budget_bytes // (2 * bytes_per_row)) // _CHUNK_ROWS * _CHUNK_ROWS
    ts_cap = min(max(_CHUNK_ROWS, ts_cap),
                 max(_CHUNK_ROWS, (max_tile_elems // 128) // _CHUNK_ROWS * _CHUNK_ROWS))
    total_tiles = _cdiv(rows_needed, ts_cap)
    # Outer "parallel" grid axis: sharded across TensorCores on multi-core chips (v7x);
    # on 1-TC v5e/v6e it is just a sequential outer loop (same work, no penalty).
    num_splits = num_core_splits if total_tiles >= num_core_splits else 1
    total_tiles = _round_up(total_tiles, num_splits)
    ts = _round_up(_cdiv(rows_needed, total_tiles), _CHUNK_ROWS)     # balanced tile rows
    s_total = total_tiles * ts
    n_pad = s_total * 128                                # bounded waste (<~1024/tile)
    tiles_per_split = total_tiles // num_splits
    chunks = ts // _CHUNK_ROWS

    # --- relayout: batch on the lane axis, sublane-dense ---------------------------------
    # TODO(synk): this transpose+pad is one extra HBM pass; produce logits in (C, N) layout
    # upstream (or fuse into the producing matmul output layout) to remove it entirely.
    logits_t = jnp.pad(jnp.transpose(logits), ((0, 0), (0, n_pad - n)))
    logits_t = logits_t.reshape(c, s_total, 128)
    # Sentinel -1 in padded targets: no class matches, so padded columns contribute 0 loss.
    targets_p = jnp.pad(targets.astype(jnp.int32), (0, n_pad - n), constant_values=-1)
    targets_p = targets_p.reshape(s_total, 128)
    alpha_v = jnp.broadcast_to(alpha.reshape(c, 1, 1), (c, 1, 128))

    kernel = functools.partial(_focal_loss_kernel, gamma=float(gamma),
                               num_classes=c, chunks=chunks)

    partials = pl.pallas_call(
        kernel,
        out_shape=jax.ShapeDtypeStruct((num_splits, _CHUNK_ROWS, 128), jnp.float32),
        grid_spec=pltpu.PrefetchScalarGridSpec(
            num_scalar_prefetch=0,
            grid=(num_splits, tiles_per_split),
            in_specs=[
                pl.BlockSpec((c, ts, 128),
                             lambda s, i: (0, s * tiles_per_split + i, 0)),   # logits
                pl.BlockSpec((ts, 128),
                             lambda s, i: (s * tiles_per_split + i, 0)),      # targets
                pl.BlockSpec((c, 1, 128), lambda s, i: (0, 0, 0)),            # alpha
            ],
            out_specs=pl.BlockSpec((1, _CHUNK_ROWS, 128), lambda s, i: (s, 0, 0)),
        ),
        compiler_params=pltpu.CompilerParams(
            dimension_semantics=("parallel", "arbitrary"),
            vmem_limit_bytes=32 * 1024 * 1024,   # fits the <=8 MiB double-buffer budget on all gens
        ),
    )(logits_t, targets_p, alpha_v)

    total = jnp.sum(partials)                    # tiny (num_splits,8,128) reduce in the wrapper
    return total / n if reduction == "mean" else total


def _reference_focal_loss(logits, targets, alpha=None, gamma=2.0, reduction="mean"):
    """Pure-JAX reference mirroring the PyTorch FocalLoss module."""
    logp = jax.nn.log_softmax(logits.astype(jnp.float32), axis=-1)
    ce = -jnp.take_along_axis(logp, targets[:, None].astype(jnp.int32), axis=-1)[:, 0]
    pt = jnp.exp(-ce)
    loss = (1.0 - pt) ** gamma * ce
    if alpha is not None:
        loss = alpha[targets] * loss
    return loss.mean() if reduction == "mean" else loss.sum()


if __name__ == "__main__":
    key = jax.random.PRNGKey(0)
    # pl.reciprocal(approx=True) trades ~1e-3 relative accuracy for a free EUP slot.
    rtol, atol = 2e-3, 1e-5

    k1, k2, k3, k4, k5, k6 = jax.random.split(key, 6)

    # Test 1: FinBERT-style shapes -- batch=8, 3 sentiment classes, gamma=2, class alpha.
    n1, c1 = 8, 3
    logits1 = jax.random.normal(k1, (n1, c1), dtype=jnp.float32) * 2.0
    targets1 = jax.random.randint(k2, (n1,), 0, c1, dtype=jnp.int32)
    alpha1 = jnp.array([0.3, 0.4, 0.3], dtype=jnp.float32)
    out1 = jax.block_until_ready(focal_loss(logits1, targets1, alpha1, gamma=2.0))
    ref1 = _reference_focal_loss(logits1, targets1, alpha1, gamma=2.0)
    assert jnp.allclose(out1, ref1, rtol=rtol, atol=atol), (out1, ref1)

    # Test 2: ragged N, multi-tile grid + dual-split ("parallel") path, integer gamma=3.
    n2 = 2500
    logits2 = jax.random.normal(k3, (n2, c1), dtype=jnp.float32) * 3.0
    targets2 = jax.random.randint(k4, (n2,), 0, c1, dtype=jnp.int32)
    out2 = jax.block_until_ready(
        focal_loss(logits2, targets2, alpha1, gamma=3.0, max_tile_elems=1024))
    ref2 = _reference_focal_loss(logits2, targets2, alpha1, gamma=3.0)
    assert jnp.allclose(out2, ref2, rtol=rtol, atol=atol), (out2, ref2)

    # Test 3: large-C vectorized class path, no alpha, reduction='sum'.
    n3, c3 = 50, 24
    logits3 = jax.random.normal(k5, (n3, c3), dtype=jnp.float32)
    targets3 = jax.random.randint(k6, (n3,), 0, c3, dtype=jnp.int32)
    out3 = jax.block_until_ready(
        focal_loss(logits3, targets3, None, gamma=2.0, reduction="sum"))
    ref3 = _reference_focal_loss(logits3, targets3, None, gamma=2.0, reduction="sum")
    assert jnp.allclose(out3, ref3, rtol=rtol, atol=atol), (out3, ref3)

    print("KERNEL_OK")
</pallas_src>

<mosaic_0001>
module attributes {stable_mosaic.version = 11 : i64} {
  func.func @_focal_loss_kernel(%arg0: i32, %arg1: i32, %arg2: memref<3x8x128xf32, #tpu.memory_space<vmem>>, %arg3: memref<8x128xi32, #tpu.memory_space<vmem>>, %arg4: memref<3x1x128xf32, #tpu.memory_space<vmem>>, %arg5: memref<1x8x128xf32, #tpu.memory_space<vmem>>) attributes {dimension_semantics = [#tpu.dimension_semantics<parallel>, #tpu.dimension_semantics<arbitrary>], iteration_bounds = array<i64: 1, 1>, scalar_prefetch = 0 : i64, scratch_operands = 0 : i64, tpu.core_type = #tpu.core_type<tc>, window_params = [{transform_indices = @transform_0, window_bounds = array<i64: 3, 8, 128>}, {transform_indices = @transform_1, window_bounds = array<i64: 8, 128>}, {pipeline_mode = #tpu.pipeline_mode<synchronous>, transform_indices = @transform_2, window_bounds = array<i64: 3, 1, 128>}, {transform_indices = @transform_3, window_bounds = array<i64: 1, 8, 128>}]} {
    %c0_i32 = arith.constant 0 : i32
    %0 = arith.cmpi eq, %arg1, %c0_i32 : i32
    %1 = arith.extui %0 : i1 to i32
    %c0_i32_0 = arith.constant 0 : i32
    %2 = arith.cmpi ne, %1, %c0_i32_0 : i32
    scf.if %2 {
      %cst_26 = arith.constant 0.000000e+00 : f32
      %83 = vector.broadcast %cst_26 : f32 to vector<1x8x128xf32>
      %c0_27 = arith.constant 0 : index
      %c0_28 = arith.constant 0 : index
      %c0_29 = arith.constant 0 : index
      %84 = vector.load %arg5[%c0_27, %c0_28, %c0_29] : memref<1x8x128xf32, #tpu.memory_space<vmem>>, vector<1x8x128xf32>
      tpu.vector_store %arg5[%c0_27, %c0_28, %c0_29], %83 {strides = array<i32>} : memref<1x8x128xf32, #tpu.memory_space<vmem>>, vector<1x8x128xf32>,
    } else {
    }
    %c0 = arith.constant 0 : index
    %c0_1 = arith.constant 0 : index
    %c0_2 = arith.constant 0 : index
    %3 = vector.load %arg4[%c0, %c0_1, %c0_2] : memref<3x1x128xf32, #tpu.memory_space<vmem>>, vector<1x1x128xf32>
    %4 = vector.shape_cast %3 : vector<1x1x128xf32> to vector<1x128xf32>
    %5 = vector.shape_cast %4 : vector<1x128xf32> to vector<1x128xf32>
    %6 = vector.broadcast %5 : vector<1x128xf32> to vector<8x128xf32>
    %c1 = arith.constant 1 : index
    %c0_3 = arith.constant 0 : index
    %c0_4 = arith.constant 0 : index
    %7 = vector.load %arg4[%c1, %c0_3, %c0_4] : memref<3x1x128xf32, #tpu.memory_space<vmem>>, vector<1x1x128xf32>
    %8 = vector.shape_cast %7 : vector<1x1x128xf32> to vector<1x128xf32>
    %9 = vector.shape_cast %8 : vector<1x128xf32> to vector<1x128xf32>
    %10 = vector.broadcast %9 : vector<1x128xf32> to vector<8x128xf32>
    %c2 = arith.constant 2 : index
    %c0_5 = arith.constant 0 : index
    %c0_6 = arith.constant 0 : index
    %11 = vector.load %arg4[%c2, %c0_5, %c0_6] : memref<3x1x128xf32, #tpu.memory_space<vmem>>, vector<1x1x128xf32>
    %12 = vector.shape_cast %11 : vector<1x1x128xf32> to vector<1x128xf32>
    %13 = vector.shape_cast %12 : vector<1x128xf32> to vector<1x128xf32>
    %14 = vector.broadcast %13 : vector<1x128xf32> to vector<8x128xf32>
    %cst = arith.constant 0.000000e+00 : f32
    %15 = vector.broadcast %cst : f32 to vector<8x128xf32>
    %c0_i32_7 = arith.constant 0 : i32
    %c8_i32 = arith.constant 8 : i32
    %16 = arith.muli %c0_i32_7, %c8_i32 : i32
    %17 = tpu.assume_multiple %16, 8 : i32
    %c0_8 = arith.constant 0 : index
    %18 = arith.index_cast %17 : i32 to index
    %c0_9 = arith.constant 0 : index
    %19 = vector.load %arg2[%c0_8, %18, %c0_9] : memref<3x8x128xf32, #tpu.memory_space<vmem>>, vector<3x8x128xf32>
    %20 = arith.index_cast %17 : i32 to index
    %c0_10 = arith.constant 0 : index
    %21 = vector.load %arg3[%20, %c0_10] : memref<8x128xi32, #tpu.memory_space<vmem>>, vector<8x128xi32>
    %22 = vector.extract_strided_slice %19 {offsets = [0, 0, 0], sizes = [1, 8, 128], strides = [1, 1, 1]} : vector<3x8x128xf32> to vector<1x8x128xf32>
    %23 = vector.shape_cast %22 : vector<1x8x128xf32> to vector<8x128xf32>
    %24 = vector.extract_strided_slice %19 {offsets = [1, 0, 0], sizes = [1, 8, 128], strides = [1, 1, 1]} : vector<3x8x128xf32> to vector<1x8x128xf32>
    %25 = vector.shape_cast %24 : vector<1x8x128xf32> to vector<8x128xf32>
    %26 = arith.maximumf %23, %25 : vector<8x128xf32>
    %27 = vector.extract_strided_slice %19 {offsets = [2, 0, 0], sizes = [1, 8, 128], strides = [1, 1, 1]} : vector<3x8x128xf32> to vector<1x8x128xf32>
    %28 = vector.shape_cast %27 : vector<1x8x128xf32> to vector<8x128xf32>
    %29 = arith.maximumf %26, %28 : vector<8x128xf32>
    %cst_11 = arith.constant 0.000000e+00 : f32
    %30 = vector.broadcast %cst_11 : f32 to vector<8x128xf32>
    %cst_12 = arith.constant 0.000000e+00 : f32
    %31 = vector.broadcast %cst_12 : f32 to vector<8x128xf32>
    %cst_13 = arith.constant 0.000000e+00 : f32
    %32 = vector.broadcast %cst_13 : f32 to vector<8x128xf32>
    %cst_14 = arith.constant 0.000000e+00 : f32
    %33 = vector.broadcast %cst_14 : f32 to vector<8x128xf32>
    %34 = vector.extract_strided_slice %19 {offsets = [0, 0, 0], sizes = [1, 8, 128], strides = [1, 1, 1]} : vector<3x8x128xf32> to vector<1x8x128xf32>
    %35 = vector.shape_cast %34 : vector<1x8x128xf32> to vector<8x128xf32>
    %36 = arith.subf %35, %29 : vector<8x128xf32>
    %37 = math.exp %36 : vector<8x128xf32>
    %38 = arith.addf %30, %37 : vector<8x128xf32>
    %c0_i32_15 = arith.constant 0 : i32
    %39 = vector.broadcast %c0_i32_15 : i32 to vector<8x128xi32>
    %40 = arith.cmpi eq, %21, %39 : vector<8x128xi32>
    %41 = arith.select %40, %35, %31 : vector<8x128xi1>, vector<8x128xf32>
    %42 = arith.select %40, %37, %32 : vector<8x128xi1>, vector<8x128xf32>
    %43 = arith.select %40, %6, %33 : vector<8x128xi1>, vector<8x128xf32>
    %44 = vector.extract_strided_slice %19 {offsets = [1, 0, 0], sizes = [1, 8, 128], strides = [1, 1, 1]} : vector<3x8x128xf32> to vector<1x8x128xf32>
    %45 = vector.shape_cast %44 : vector<1x8x128xf32> to vector<8x128xf32>
    %46 = arith.subf %45, %29 : vector<8x128xf32>
    %47 = math.exp %46 : vector<8x128xf32>
    %48 = arith.addf %38, %47 : vector<8x128xf32>
    %c1_i32 = arith.constant 1 : i32
    %49 = vector.broadcast %c1_i32 : i32 to vector<8x128xi32>
    %50 = arith.cmpi eq, %21, %49 : vector<8x128xi32>
    %51 = arith.select %50, %45, %41 : vector<8x128xi1>, vector<8x128xf32>
    %52 = arith.select %50, %47, %42 : vector<8x128xi1>, vector<8x128xf32>
    %53 = arith.select %50, %10, %43 : vector<8x128xi1>, vector<8x128xf32>
    %54 = vector.extract_strided_slice %19 {offsets = [2, 0, 0], sizes = [1, 8, 128], strides = [1, 1, 1]} : vector<3x8x128xf32> to vector<1x8x128xf32>
    %55 = vector.shape_cast %54 : vector<1x8x128xf32> to vector<8x128xf32>
    %56 = arith.subf %55, %29 : vector<8x128xf32>
    %57 = math.exp %56 : vector<8x128xf32>
    %58 = arith.addf %48, %57 : vector<8x128xf32>
    %c2_i32 = arith.constant 2 : i32
    %59 = vector.broadcast %c2_i32 : i32 to vector<8x128xi32>
    %60 = arith.cmpi eq, %21, %59 : vector<8x128xi32>
    %61 = arith.select %60, %55, %51 : vector<8x128xi1>, vector<8x128xf32>
    %62 = arith.select %60, %57, %52 : vector<8x128xi1>, vector<8x128xf32>
    %63 = arith.select %60, %14, %53 : vector<8x128xi1>, vector<8x128xf32>
    %64 = math.log %58 : vector<8x128xf32>
    %65 = arith.subf %29, %61 : vector<8x128xf32>
    %66 = arith.addf %64, %65 : vector<8x128xf32>
    %cst_16 = arith.constant 0.000000e+00 : f32
    %67 = vector.broadcast %cst_16 : f32 to vector<8x128xf32>
    %68 = arith.maximumf %66, %67 : vector<8x128xf32>
    %69 = tpu.reciprocal %58 {approx = true} : vector<8x128xf32> -> vector<8x128xf32>
    %70 = arith.mulf %62, %69 : vector<8x128xf32>
    %cst_17 = arith.constant 1.000000e+00 : f32
    %71 = vector.broadcast %cst_17 : f32 to vector<8x128xf32>
    %72 = arith.subf %71, %70 : vector<8x128xf32>
    %cst_18 = arith.constant 0.000000e+00 : f32
    %73 = vector.broadcast %cst_18 : f32 to vector<8x128xf32>
    %74 = arith.maximumf %72, %73 : vector<8x128xf32>
    %75 = arith.mulf %74, %74 : vector<8x128xf32>
    %76 = arith.mulf %63, %75 : vector<8x128xf32>
    %77 = arith.mulf %76, %68 : vector<8x128xf32>
    %78 = arith.addf %15, %77 : vector<8x128xf32>
    %c1_i32_19 = arith.constant 1 : i32
    %c0_20 = arith.constant 0 : index
    %c0_21 = arith.constant 0 : index
    %c0_22 = arith.constant 0 : index
    %79 = vector.load %arg5[%c0_20, %c0_21, %c0_22] : memref<1x8x128xf32, #tpu.memory_space<vmem>>, vector<1x8x128xf32>
    %80 = vector.shape_cast %78 : vector<8x128xf32> to vector<1x8x128xf32>
    %81 = arith.addf %79, %80 : vector<1x8x128xf32>
    %c0_23 = arith.constant 0 : index
    %c0_24 = arith.constant 0 : index
    %c0_25 = arith.constant 0 : index
    %82 = vector.load %arg5[%c0_23, %c0_24, %c0_25] : memref<1x8x128xf32, #tpu.memory_space<vmem>>, vector<1x8x128xf32>
    tpu.vector_store %arg5[%c0_23, %c0_24, %c0_25], %81 {strides = array<i32>} : memref<1x8x128xf32, #tpu.memory_space<vmem>>, vector<1x8x128xf32>,
    return
  }
  func.func @transform_0(%arg0: i32, %arg1: i32) -> (i32, i32, i32) {
    %c1_i32 = arith.constant 1 : i32
    %0 = arith.muli %arg0, %c1_i32 : i32
    %1 = arith.addi %0, %arg1 : i32
    %c0_i32 = arith.constant 0 : i32
    %c0_i32_0 = arith.constant 0 : i32
    %c0_i32_1 = arith.constant 0 : i32
    return %c0_i32, %1, %c0_i32_0 : i32, i32, i32
  }
  func.func @transform_1(%arg0: i32, %arg1: i32) -> (i32, i32) {
    %c1_i32 = arith.constant 1 : i32
    %0 = arith.muli %arg0, %c1_i32 : i32
    %1 = arith.addi %0, %arg1 : i32
    %c0_i32 = arith.constant 0 : i32
    %c0_i32_0 = arith.constant 0 : i32
    return %1, %c0_i32 : i32, i32
  }
  func.func @transform_2(%arg0: i32, %arg1: i32) -> (i32, i32, i32) {
    %c0_i32 = arith.constant 0 : i32
    %c0_i32_0 = arith.constant 0 : i32
    %c0_i32_1 = arith.constant 0 : i32
    %c0_i32_2 = arith.constant 0 : i32
    return %c0_i32, %c0_i32_0, %c0_i32_1 : i32, i32, i32
  }
  func.func @transform_3(%arg0: i32, %arg1: i32) -> (i32, i32, i32) {
    %c0_i32 = arith.constant 0 : i32
    %c0_i32_0 = arith.constant 0 : i32
    %c0_i32_1 = arith.constant 0 : i32
    return %arg0, %c0_i32, %c0_i32_0 : i32, i32, i32
  }
}

</mosaic_0001>

<llo_original>
// kernel: tpu_custom_call.1
$region0: #{tpu_custom_call.1}
  #allocation0 [shape = 'u32[]', space=smem, size = 0x4, offset = 0x4, fixed_abs, tag = 'smem constant byte address 0x4 - core index']
  #allocation1 [shape = 'u32[144,128]{1,0:T(1,128)}', space=vmem, size = 0x12000, scoped, tag = 'internal scratch']
  %s0 = inlined_call_operand.hbm [shape: f32[3,8,128], index: 0, kind: input, shape index: {}]
  %s1 = inlined_call_operand.hbm [shape: s32[8,128], index: 1, kind: input, shape index: {}]
  %s2 = inlined_call_operand.vmem [shape: f32[3,1,128], index: 2, kind: input, shape index: {}]
  %s3 = inlined_call_operand.hbm [shape: f32[1,8,128], index: 3, kind: output, shape index: {}]
  %s4 = sld [smem:[#allocation0]]
  $region34: #{tpu_custom_call.1} parent=0
    _
  %s6 = ssub.s32 1, %s4
  %s7 = scalar_select 0, %s6, %s4
  $region1: #{tpu_custom_call.1} parent=0
    #allocation2 [shape = 'u8[12288]{0}', space=vmem, size = 0x3000, scoped, tag = 'input window, operand 0, single buffered']
    #allocation3 [shape = 's32[1]{0}', space=sflag, size = 0x4, scoped, tag = 'scoped memory for tpu_custom_call.1']
    #allocation4 [shape = 's32[1]{0}', space=sflag, size = 0x4, scoped, tag = 'scoped memory for tpu_custom_call.1']
    #allocation5 [shape = 'u8[4096]{0}', space=vmem, size = 0x1000, scoped, tag = 'input window, operand 1, single buffered']
    #allocation6 [shape = 's32[1]{0}', space=sflag, size = 0x4, scoped, tag = 'scoped memory for tpu_custom_call.1']
    #allocation7 [shape = 'u8[4096]{0}', space=vmem, size = 0x1000, scoped, tag = 'output window, operand 0, single buffered']
    %8 = vsyncpa [#allocation3], 0
    %9 = vsyncpa [#allocation6], 0
    %10 = vsyncpa [#allocation4], 0
    // Predicated region
    $region2: #{tpu_custom_call.1} parent=1 // pred_check
      _
    $region3: #{tpu_custom_call.1} parent=1 // pred_check_branch
      %12 = sbr.rel (0) target = $region5
    $region4: #{tpu_custom_call.1} parent=1 // pred_region
      %s13 = sadd.s32 0, 0
      %s15 = ssub.s32 384, 384
      %16 = vsyncadd [#allocation3], %s15
      %s17 = smul.addr %s13, 128
      %s18 = scalar_lea.hbm %s0, %s17
      %s19 = sshll.u32 [#allocation2], 4
      %s20 = int_to_ptr.vmem [resolvable:$true] %s19
      %25 = dma.hbm_to_vmem [thread:$0]  %s18, 384, %s20, [#allocation3], 128, 128, 8
    $region5: #{tpu_custom_call.1} parent=1 // pred_fallthru
      _
    // Predicated region
    $region6: #{tpu_custom_call.1} parent=1 // pred_check
      _
    $region7: #{tpu_custom_call.1} parent=1 // pred_check_branch
      %27 = sbr.rel (0) target = $region9
    $region8: #{tpu_custom_call.1} parent=1 // pred_region
      %s28 = sadd.s32 0, 0
      %s30 = ssub.s32 128, 128
      %31 = vsyncadd [#allocation6], %s30
      %s32 = smul.addr %s28, 128
      %s33 = scalar_lea.hbm %s1, %s32
      %s35 = sshll.u32 [#allocation5], 4
      %s36 = int_to_ptr.vmem [resolvable:$true] %s35
      %38 = dma.hbm_to_vmem [thread:$0]  %s33, 128, %s36, [#allocation6]
    $region9: #{tpu_custom_call.1} parent=1 // pred_fallthru
      _
    // Predicated region
    $region10: #{tpu_custom_call.1} parent=1 // pred_check
      _
    $region11: #{tpu_custom_call.1} parent=1 // pred_check_branch
      %40 = sbr.rel (0) target = $region13
    $region12: #{tpu_custom_call.1} parent=1 // pred_region
      _
    $region13: #{tpu_custom_call.1} parent=1 // pred_fallthru
      _
    // Predicated region
    $region14: #{tpu_custom_call.1} parent=1 // pred_check
      _
    $region15: #{tpu_custom_call.1} parent=1 // pred_check_branch
      %42 = sbr.rel (0) target = $region17
    $region16: #{tpu_custom_call.1} parent=1 // pred_region
      %43 = dma.done [#allocation3], 384
    $region17: #{tpu_custom_call.1} parent=1 // pred_fallthru
      _
    // Predicated region
    $region18: #{tpu_custom_call.1} parent=1 // pred_check
      _
    $region19: #{tpu_custom_call.1} parent=1 // pred_check_branch
      %45 = sbr.rel (0) target = $region21
    $region20: #{tpu_custom_call.1} parent=1 // pred_region
      %46 = dma.done [#allocation6], 128
    $region21: #{tpu_custom_call.1} parent=1 // pred_fallthru
      _
    %s47 = sadd.s32 0, 0
    %s48 = sadd.s32 0, 0
    %p49 = scmp.eq.s32.totalorder 0, 0
    // Predicated region
    $region22: #{tpu_custom_call.1} parent=1 // pred_check
      %p50 = pneg %p49
    $region23: #{tpu_custom_call.1} parent=1 // pred_check_branch
      %52 = sbr.rel (%p50) target = $region25
    $region24: #{tpu_custom_call.1} parent=1 // pred_region
      %53 = vst [vmem:[#allocation7] sm:$0xff] 0.0
    $region25: #{tpu_custom_call.1} parent=1 // pred_fallthru
      _
    %v54 = vld [vmem:[%s2] sm:$0x1]
    %v56 = vlaneseq
    %v57 = vshrl.u32 %v56, 7
    %v58 = vsub.s32 0, %v57
    %v59 = vrot.slane %v54, %v58
    %s61 = scalar_lea.vmem %s2, 1
    %v62 = vld [vmem:[%s61] sm:$0x1]
    %v64 = vlaneseq
    %v65 = vshrl.u32 %v64, 7
    %v66 = vsub.s32 0, %v65
    %v67 = vrot.slane %v62, %v66
    %s69 = scalar_lea.vmem %s2, 2
    %v70 = vld [vmem:[%s69] sm:$0x1]
    %v72 = vlaneseq
    %v73 = vshrl.u32 %v72, 7
    %v74 = vsub.s32 0, %v73
    %v75 = vrot.slane %v70, %v74
    %v77 = vld [vmem:[#allocation2] sm:$0xff]
    %v78 = vld [vmem:[#allocation2 + $0x8] sm:$0xff]
    %v79 = vld [vmem:[#allocation2 + $0x10] sm:$0xff]
    %v80 = vld [vmem:[#allocation5] sm:$0xff]
    %v81 = vmax.f32 %v77, %v78
    %v82 = vmax.f32 %v81, %v79
    %v83 = vsub.f32 %v77, %v82
    %v84 = vmul.f32 %v83, 1.442695
    %v85 = vpow.pop %v84
    %v86 = vadd.f32 %v85, 0.0
    %vm87 = vcmp.eq.s32.totalorder %v80, 0
    %v88 = vsel %vm87, %v77, 0.0
    %v89 = vsel %vm87, %v85, 0.0
    %v90 = vsel %vm87, %v59, 0.0
    %v91 = vsub.f32 %v78, %v82
    %v92 = vmul.f32 %v91, 1.442695
    %v93 = vpow.pop %v92
    %v94 = vadd.f32 %v86, %v93
    %vm95 = vcmp.eq.s32.totalorder %v80, 1
    %v96 = vsel %vm95, %v78, %v88
    %v97 = vsel %vm95, %v93, %v89
    %v98 = vsel %vm95, %v67, %v90
    %v99 = vsub.f32 %v79, %v82
    %v100 = vmul.f32 %v99, 1.442695
    %v101 = vpow.pop %v100
    %v102 = vadd.f32 %v94, %v101
    %vm103 = vcmp.eq.s32.totalorder %v80, 2
    %v104 = vsel %vm103, %v79, %v96
    %v105 = vsel %vm103, %v101, %v97
    %v106 = vsel %vm103, %v75, %v98
    %v107 = vlog2.pop %v102
    %v108 = vmul.f32 %v107, 0.6931472
    %v109 = vsub.f32 %v82, %v104
    %v110 = vadd.f32 %v108, %v109
    %v111 = vmax.f32 %v110, 0.0
    %v112 = vrcp.pop %v102
    %v113 = vmul.f32 %v105, %v112
    %v114 = vsub.f32 1.0, %v113
    %v115 = vmax.f32 %v114, 0.0
    %v116 = vmul.f32 %v115, %v115
    %v117 = vmul.f32 %v106, %v116
    %v118 = vmul.f32 %v117, %v111
    %v119 = vadd.f32 %v118, 0.0
    %v120 = vld [vmem:[#allocation7] sm:$0xff]
    %v121 = vadd.f32 %v120, %v119
    %122 = vst [vmem:[#allocation7] sm:$0xff] %v121
    // Predicated region
    $region26: #{tpu_custom_call.1} parent=1 // pred_check
      _
    $region27: #{tpu_custom_call.1} parent=1 // pred_check_branch
      %124 = sbr.rel (0) target = $region29
    $region28: #{tpu_custom_call.1} parent=1 // pred_region
      %s126 = ssub.s32 128, 128
      %127 = vsyncadd [#allocation4], %s126
      %s129 = sshll.u32 [#allocation7], 4
      %s130 = int_to_ptr.vmem [resolvable:$true] %s129
      %132 = dma.vmem_to_hbm [thread:$0]  %s130, 128, %s3, [#allocation4]
    $region29: #{tpu_custom_call.1} parent=1 // pred_fallthru
      _
    // Predicated region
    $region30: #{tpu_custom_call.1} parent=1 // pred_check
      _
    $region31: #{tpu_custom_call.1} parent=1 // pred_check_branch
      %134 = sbr.rel (0) target = $region33
    $region32: #{tpu_custom_call.1} parent=1 // pred_region
      %135 = dma.done [#allocation4], 128
    $region33: #{tpu_custom_call.1} parent=1 // pred_fallthru
      _
    %136 = vsyncpa [#allocation3], 1
    %137 = vsyncpa [#allocation6], 1
    %138 = vsyncpa [#allocation4], 1

</llo_original>
